<compile_context>
chip_gen: v7x
topology: tpu7x:2x2x1
jax: 0.10.0
libtpu: 0.0.40
codegen_flags: <defaults>
</compile_context>

<pallas_src>
import functools

import jax
import jax.numpy as jnp
from jax.experimental import pallas as pl
from jax.experimental.pallas import tpu as pltpu

LANE = 128            # vreg lane width / MXU tile width
ROW_ALIGN = 16        # bf16 sublane packing (also covers f32's 8)
MAX_BATCH_TILE = 1024 # ~0.35us/grid-step overhead; roofline flat by ~1024 rows
MIN_SPLIT_BATCH = 256 # below this, one tile beats two grid steps


def _round_up(n, m):
    return ((n + m - 1) // m) * m


def _cdiv(a, b):
    return (a + b - 1) // b


def _qnet_kernel(x_ref, w1_ref, b1_ref, w2_ref, b2_ref, o_ref):
    # x arrives unpadded (TB, in_size) f32 straight from HBM; bf16 cast on VPU
    # slack so the wrapper needs no separate pad/cast dispatch.
    x = x_ref[...].astype(jnp.bfloat16)
    # hidden = relu(x @ W1 + b1): bf16 MXU matmul (short K = in_size), f32 acc.
    h = jnp.dot(x, w1_ref[...], preferred_element_type=jnp.float32)
    # Fuse bias + ReLU + bf16 downcast so the f32 hidden tile never
    # round-trips VMEM (v5e has a single vst slot).
    h = jnp.maximum(h + b1_ref[...], 0.0).astype(jnp.bfloat16)
    # out = hidden @ W2 + b2: f32 accumulation, lane-dense bf16 store
    # (halves the dominant (B_pad, 128) HBM writeback).
    y = jnp.dot(h, w2_ref[...], preferred_element_type=jnp.float32)
    o_ref[...] = (y + b2_ref[...]).astype(o_ref.dtype)


def _choose_batch_tile(batch):
    num_tiles = _cdiv(batch, MAX_BATCH_TILE)
    if batch >= MIN_SPLIT_BATCH:
        # >=2 grid steps so v7x's two TensorCores both work; harmless elsewhere.
        num_tiles = max(num_tiles, 2)
    return _round_up(_cdiv(batch, num_tiles), ROW_ALIGN)


@functools.partial(jax.jit, static_argnames=("out_size",))
def linear_qnet_forward(x, w1_p, b1_p, w2_p, b2_p, *, out_size):
    """Forward pass.

    x:    (B, in_size)        float32 (unpadded)
    w1_p: (in_size, hid_pad)  bfloat16, = linear1.weight.T, zero-padded cols
    b1_p: (1, hid_pad)        float32, zero-padded
    w2_p: (hid_pad, out_pad)  bfloat16, = linear2.weight.T, zero-padded
    b2_p: (1, out_pad)        float32, zero-padded
    Returns (B, out_size) float32.
    """
    B, in_size = x.shape
    hid_pad = w1_p.shape[1]
    out_pad = w2_p.shape[1]

    TB = _choose_batch_tile(B)
    grid_n = _cdiv(B, TB)
    B_pad = grid_n * TB

    out_padded = pl.pallas_call(
        _qnet_kernel,
        out_shape=jax.ShapeDtypeStruct((B_pad, out_pad), jnp.bfloat16),
        grid_spec=pltpu.PrefetchScalarGridSpec(
            num_scalar_prefetch=0,
            grid=(grid_n,),
            in_specs=[
                # x: unpadded, tiled over batch.  Last block dim == full array
                # dim so no (8,128) constraint; rows past B in a partial final
                # tile only affect output rows that get sliced off below.
                pl.BlockSpec((TB, in_size), lambda i: (i, 0)),
                # weights / biases: VMEM-resident across all batch tiles.
                pl.BlockSpec((in_size, hid_pad), lambda i: (0, 0)),
                pl.BlockSpec((1, hid_pad), lambda i: (0, 0)),
                pl.BlockSpec((hid_pad, out_pad), lambda i: (0, 0)),
                pl.BlockSpec((1, out_pad), lambda i: (0, 0)),
            ],
            out_specs=pl.BlockSpec((TB, out_pad), lambda i: (i, 0)),
        ),
        compiler_params=pltpu.CompilerParams(
            dimension_semantics=("parallel",)),   # megacore split over batch
    )(x, w1_p, b1_p, w2_p, b2_p)

    # Slice + f32 upcast fuse into one small XLA op.
    return out_padded[:B, :out_size].astype(jnp.float32)


def init_params(key, input_size, hidden_size, output_size):
    """nn.Linear-style init U(-1/sqrt(fan_in), +1/sqrt(fan_in)); pad once.

    W1 stays unpadded along K (= input_size) so x can be fed to the kernel
    without a pad dispatch; hidden/output dims are padded to a lane-dense 128.
    Returns (padded_params, unpadded_f32_params_for_reference).
    """
    k1, k2, k3, k4 = jax.random.split(key, 4)
    bound1 = 1.0 / jnp.sqrt(input_size)
    bound2 = 1.0 / jnp.sqrt(hidden_size)
    w1 = jax.random.uniform(k1, (input_size, hidden_size), jnp.float32, -bound1, bound1)
    b1 = jax.random.uniform(k2, (hidden_size,), jnp.float32, -bound1, bound1)
    w2 = jax.random.uniform(k3, (hidden_size, output_size), jnp.float32, -bound2, bound2)
    b2 = jax.random.uniform(k4, (output_size,), jnp.float32, -bound2, bound2)

    hid_pad = _round_up(hidden_size, LANE)   # keep at 128; wider only adds zero-FLOPs/DMA
    out_pad = _round_up(output_size, LANE)   # lane-dense output slab

    # Zero padding keeps padded lanes inert (padded W cols/rows are 0).
    w1_p = (jnp.zeros((input_size, hid_pad), jnp.float32)
            .at[:, :hidden_size].set(w1).astype(jnp.bfloat16))
    b1_p = jnp.zeros((1, hid_pad), jnp.float32).at[0, :hidden_size].set(b1)
    w2_p = (jnp.zeros((hid_pad, out_pad), jnp.float32)
            .at[:hidden_size, :output_size].set(w2).astype(jnp.bfloat16))
    b2_p = jnp.zeros((1, out_pad), jnp.float32).at[0, :output_size].set(b2)

    return (w1_p, b1_p, w2_p, b2_p), (w1, b1, w2, b2)


def _reference(x, w1, b1, w2, b2, bf16=True):
    """Plain-JAX reference matching the kernel's dtype pipeline."""
    if bf16:
        xb, w1b, w2b = (a.astype(jnp.bfloat16) for a in (x, w1, w2))
        h = jnp.maximum(jnp.dot(xb, w1b, preferred_element_type=jnp.float32) + b1, 0.0)
        y = jnp.dot(h.astype(jnp.bfloat16), w2b, preferred_element_type=jnp.float32) + b2
        return y.astype(jnp.bfloat16).astype(jnp.float32)   # kernel stores bf16
    h = jnp.maximum(jnp.dot(x, w1) + b1, 0.0)
    return jnp.dot(h, w2) + b2


if __name__ == "__main__":
    # Snake Q-net shapes: 11 state features -> 32 hidden -> 3 actions.
    input_size, hidden_size, output_size = 11, 32, 3
    batch = 8

    key = jax.random.PRNGKey(0)
    kx, kp, kx2, kx3 = jax.random.split(key, 4)
    x = jax.random.normal(kx, (batch, input_size), jnp.float32)
    (w1_p, b1_p, w2_p, b2_p), (w1, b1, w2, b2) = init_params(
        kp, input_size, hidden_size, output_size)

    # Small (inference-sized) batch: single tile, no wrapper padding.
    out = linear_qnet_forward(x, w1_p, b1_p, w2_p, b2_p, out_size=output_size)
    out = jax.block_until_ready(out)
    assert out.shape == (batch, output_size)
    assert jnp.allclose(out, _reference(x, w1, b1, w2, b2, bf16=True),
                        atol=1e-2, rtol=1e-2)
    assert jnp.allclose(out, _reference(x, w1, b1, w2, b2, bf16=False),
                        atol=5e-2, rtol=5e-2)

    # Odd batch: exercises the 2-tile grid with a partial final x block.
    odd_batch = 600
    x_odd = jax.random.normal(kx3, (odd_batch, input_size), jnp.float32)
    out_odd = linear_qnet_forward(x_odd, w1_p, b1_p, w2_p, b2_p, out_size=output_size)
    out_odd = jax.block_until_ready(out_odd)
    assert out_odd.shape == (odd_batch, output_size)
    assert jnp.allclose(out_odd, _reference(x_odd, w1, b1, w2, b2, bf16=True),
                        atol=1e-2, rtol=1e-2)

    # Replay-buffer-sized batch: 2 full tiles, both TensorCores busy on v7x.
    big_batch = 1024
    x_big = jax.random.normal(kx2, (big_batch, input_size), jnp.float32)
    out_big = linear_qnet_forward(x_big, w1_p, b1_p, w2_p, b2_p, out_size=output_size)
    out_big = jax.block_until_ready(out_big)
    assert out_big.shape == (big_batch, output_size)
    assert jnp.allclose(out_big, _reference(x_big, w1, b1, w2, b2, bf16=True),
                        atol=1e-2, rtol=1e-2)

    print("KERNEL_OK")
</pallas_src>

<mosaic_0001>
module attributes {stable_mosaic.version = 11 : i64} {
  func.func @_qnet_kernel(%arg0: i32, %arg1: memref<16x11xf32, #tpu.memory_space<vmem>>, %arg2: memref<11x128xbf16, #tpu.memory_space<vmem>>, %arg3: memref<1x128xf32, #tpu.memory_space<vmem>>, %arg4: memref<128x128xbf16, #tpu.memory_space<vmem>>, %arg5: memref<1x128xf32, #tpu.memory_space<vmem>>, %arg6: memref<16x128xbf16, #tpu.memory_space<vmem>>) attributes {dimension_semantics = [#tpu.dimension_semantics<parallel>], iteration_bounds = array<i64: 1>, scalar_prefetch = 0 : i64, scratch_operands = 0 : i64, tpu.core_type = #tpu.core_type<tc>, window_params = [{transform_indices = @transform_0, window_bounds = array<i64: 16, 11>}, {pipeline_mode = #tpu.pipeline_mode<synchronous>, transform_indices = @transform_1, window_bounds = array<i64: 11, 128>}, {pipeline_mode = #tpu.pipeline_mode<synchronous>, transform_indices = @transform_2, window_bounds = array<i64: 1, 128>}, {pipeline_mode = #tpu.pipeline_mode<synchronous>, transform_indices = @transform_3, window_bounds = array<i64: 128, 128>}, {pipeline_mode = #tpu.pipeline_mode<synchronous>, transform_indices = @transform_4, window_bounds = array<i64: 1, 128>}, {transform_indices = @transform_5, window_bounds = array<i64: 16, 128>}]} {
    %c0 = arith.constant 0 : index
    %c0_0 = arith.constant 0 : index
    %0 = vector.load %arg1[%c0, %c0_0] : memref<16x11xf32, #tpu.memory_space<vmem>>, vector<16x11xf32>
    %1 = arith.truncf %0 : vector<16x11xf32> to vector<16x11xbf16>
    %c0_1 = arith.constant 0 : index
    %c0_2 = arith.constant 0 : index
    %2 = vector.load %arg2[%c0_1, %c0_2] : memref<11x128xbf16, #tpu.memory_space<vmem>>, vector<11x128xbf16>
    %cst = arith.constant dense<0.000000e+00> : vector<16x128xf32>
    %3 = tpu.matmul %1, %2, %cst {dimension_numbers = #tpu.dot_dimension_numbers<[1], [0], [0], [1], [0, 0, 1, 1], [], []>} : vector<16x11xbf16>, vector<11x128xbf16>, vector<16x128xf32> -> vector<16x128xf32>
    %c0_3 = arith.constant 0 : index
    %c0_4 = arith.constant 0 : index
    %4 = vector.load %arg3[%c0_3, %c0_4] : memref<1x128xf32, #tpu.memory_space<vmem>>, vector<1x128xf32>
    %5 = vector.broadcast %4 : vector<1x128xf32> to vector<16x128xf32>
    %6 = arith.addf %3, %5 : vector<16x128xf32>
    %cst_5 = arith.constant 0.000000e+00 : f32
    %7 = vector.broadcast %cst_5 : f32 to vector<16x128xf32>
    %8 = arith.maximumf %6, %7 : vector<16x128xf32>
    %9 = arith.truncf %8 : vector<16x128xf32> to vector<16x128xbf16>
    %c0_6 = arith.constant 0 : index
    %c0_7 = arith.constant 0 : index
    %10 = vector.load %arg4[%c0_6, %c0_7] : memref<128x128xbf16, #tpu.memory_space<vmem>>, vector<128x128xbf16>
    %cst_8 = arith.constant dense<0.000000e+00> : vector<16x128xf32>
    %11 = tpu.matmul %9, %10, %cst_8 {dimension_numbers = #tpu.dot_dimension_numbers<[1], [0], [0], [1], [0, 0, 1, 1], [], []>} : vector<16x128xbf16>, vector<128x128xbf16>, vector<16x128xf32> -> vector<16x128xf32>
    %c0_9 = arith.constant 0 : index
    %c0_10 = arith.constant 0 : index
    %12 = vector.load %arg5[%c0_9, %c0_10] : memref<1x128xf32, #tpu.memory_space<vmem>>, vector<1x128xf32>
    %13 = vector.broadcast %12 : vector<1x128xf32> to vector<16x128xf32>
    %14 = arith.addf %11, %13 : vector<16x128xf32>
    %15 = arith.truncf %14 : vector<16x128xf32> to vector<16x128xbf16>
    %c0_11 = arith.constant 0 : index
    %c0_12 = arith.constant 0 : index
    %16 = vector.load %arg6[%c0_11, %c0_12] : memref<16x128xbf16, #tpu.memory_space<vmem>>, vector<16x128xbf16>
    tpu.vector_store %arg6[%c0_11, %c0_12], %15 {strides = array<i32>} : memref<16x128xbf16, #tpu.memory_space<vmem>>, vector<16x128xbf16>,
    return
  }
  func.func @transform_0(%arg0: i32) -> (i32, i32) {
    %c0_i32 = arith.constant 0 : i32
    %c0_i32_0 = arith.constant 0 : i32
    return %arg0, %c0_i32 : i32, i32
  }
  func.func @transform_1(%arg0: i32) -> (i32, i32) {
    %c0_i32 = arith.constant 0 : i32
    %c0_i32_0 = arith.constant 0 : i32
    %c0_i32_1 = arith.constant 0 : i32
    return %c0_i32, %c0_i32_0 : i32, i32
  }
  func.func @transform_2(%arg0: i32) -> (i32, i32) {
    %c0_i32 = arith.constant 0 : i32
    %c0_i32_0 = arith.constant 0 : i32
    %c0_i32_1 = arith.constant 0 : i32
    return %c0_i32, %c0_i32_0 : i32, i32
  }
  func.func @transform_3(%arg0: i32) -> (i32, i32) {
    %c0_i32 = arith.constant 0 : i32
    %c0_i32_0 = arith.constant 0 : i32
    %c0_i32_1 = arith.constant 0 : i32
    return %c0_i32, %c0_i32_0 : i32, i32
  }
  func.func @transform_4(%arg0: i32) -> (i32, i32) {
    %c0_i32 = arith.constant 0 : i32
    %c0_i32_0 = arith.constant 0 : i32
    %c0_i32_1 = arith.constant 0 : i32
    return %c0_i32, %c0_i32_0 : i32, i32
  }
  func.func @transform_5(%arg0: i32) -> (i32, i32) {
    %c0_i32 = arith.constant 0 : i32
    %c0_i32_0 = arith.constant 0 : i32
    return %arg0, %c0_i32 : i32, i32
  }
}

</mosaic_0001>

<llo_original>
// kernel: linear_qnet_forward.1
$region0: #{linear_qnet_forward.1}
  #allocation0 [shape = 'u32[]', space=smem, size = 0x4, offset = 0x4, fixed_abs, tag = 'smem constant byte address 0x4 - core index']
  #allocation1 [shape = 'u32[144,128]{1,0:T(1,128)}', space=vmem, size = 0x12000, scoped, tag = 'internal scratch']
  %s0 = inlined_call_operand.hbm [shape: f32[8,11], index: 0, kind: input, shape index: {}]
  %s1 = inlined_call_operand.hbm [shape: bf16[11,128], index: 1, kind: input, shape index: {}]
  %s2 = inlined_call_operand.vmem [shape: f32[1,128], index: 2, kind: input, shape index: {}]
  %s3 = inlined_call_operand.hbm [shape: bf16[128,128], index: 3, kind: input, shape index: {}]
  %s4 = inlined_call_operand.vmem [shape: f32[1,128], index: 4, kind: input, shape index: {}]
  %s5 = inlined_call_operand.vmem [shape: bf16[16,128], index: 5, kind: output, shape index: {}]
  %s6 = sld [smem:[#allocation0]]
  $region42: #{linear_qnet_forward.1} parent=0
    _
  %s8 = ssub.s32 1, %s6
  %s9 = scalar_select 0, %s8, %s6
  $region1: #{linear_qnet_forward.1} parent=0
    #allocation2 [shape = 'u8[8192]{0}', space=vmem, size = 0x2000, scoped, tag = 'input window, operand 0, single buffered']
    #allocation3 [shape = 's32[1]{0}', space=sflag, size = 0x4, scoped, tag = 'scoped memory for linear_qnet_forward.1']
    #allocation4 [shape = 'u8[4096]{0}', space=vmem, size = 0x1000, scoped, tag = 'input window, operand 1, single buffered']
    #allocation5 [shape = 's32[1]{0}', space=sflag, size = 0x4, scoped, tag = 'scoped memory for linear_qnet_forward.1']
    #allocation6 [shape = 'u8[32768]{0}', space=vmem, size = 0x8000, scoped, tag = 'input window, operand 3, single buffered']
    %10 = vsyncpa [#allocation3], 0
    %11 = vsyncpa [#allocation5], 0
    // Predicated region
    $region2: #{linear_qnet_forward.1} parent=1 // pred_check
      _
    $region3: #{linear_qnet_forward.1} parent=1 // pred_check_branch
      %13 = sbr.rel (0) target = $region5
    $region4: #{linear_qnet_forward.1} parent=1 // pred_region
      %s15 = ssub.s32 256, 128
      %16 = vsyncadd [#allocation3], %s15
      %s17 = sshll.u32 [#allocation2], 4
      %s18 = int_to_ptr.vmem [resolvable:$true] %s17
      %23 = dma.hbm_to_vmem [thread:$0]  %s0, 128, %s18, [#allocation3], 128, 128, 8
    $region5: #{linear_qnet_forward.1} parent=1 // pred_fallthru
      _
    // Predicated region
    $region6: #{linear_qnet_forward.1} parent=1 // pred_check
      _
    $region7: #{linear_qnet_forward.1} parent=1 // pred_check_branch
      %25 = sbr.rel (0) target = $region9
    $region8: #{linear_qnet_forward.1} parent=1 // pred_region
      %s27 = ssub.s32 128, 128
      %28 = vsyncadd [#allocation5], %s27
      %s29 = sshll.u32 [#allocation4], 4
      %s30 = int_to_ptr.vmem [resolvable:$true] %s29
      %35 = dma.hbm_to_vmem [thread:$0]  %s1, 128, %s30, [#allocation5], 64, 64, 4
    $region9: #{linear_qnet_forward.1} parent=1 // pred_fallthru
      _
    // Predicated region
    $region10: #{linear_qnet_forward.1} parent=1 // pred_check
      _
    $region11: #{linear_qnet_forward.1} parent=1 // pred_check_branch
      %37 = sbr.rel (0) target = $region13
    $region12: #{linear_qnet_forward.1} parent=1 // pred_region
      _
    $region13: #{linear_qnet_forward.1} parent=1 // pred_fallthru
      _
    // Predicated region
    $region14: #{linear_qnet_forward.1} parent=1 // pred_check
      _
    $region15: #{linear_qnet_forward.1} parent=1 // pred_check_branch
      %39 = sbr.rel (0) target = $region17
    $region16: #{linear_qnet_forward.1} parent=1 // pred_region
      %s41 = ssub.s32 1024, 1024
      %42 = vsyncadd [#allocation5], %s41
      %s43 = sshll.u32 [#allocation6], 4
      %s44 = int_to_ptr.vmem [resolvable:$true] %s43
      %49 = dma.hbm_to_vmem [thread:$0]  %s3, 1024, %s44, [#allocation5], 64, 64, 4
    $region17: #{linear_qnet_forward.1} parent=1 // pred_fallthru
      _
    // Predicated region
    $region18: #{linear_qnet_forward.1} parent=1 // pred_check
      _
    $region19: #{linear_qnet_forward.1} parent=1 // pred_check_branch
      %51 = sbr.rel (0) target = $region21
    $region20: #{linear_qnet_forward.1} parent=1 // pred_region
      _
    $region21: #{linear_qnet_forward.1} parent=1 // pred_fallthru
      _
    // Predicated region
    $region22: #{linear_qnet_forward.1} parent=1 // pred_check
      _
    $region23: #{linear_qnet_forward.1} parent=1 // pred_check_branch
      %53 = sbr.rel (0) target = $region25
    $region24: #{linear_qnet_forward.1} parent=1 // pred_region
      %54 = dma.done [#allocation3], 256
    $region25: #{linear_qnet_forward.1} parent=1 // pred_fallthru
      _
    // Predicated region
    $region26: #{linear_qnet_forward.1} parent=1 // pred_check
      _
    $region27: #{linear_qnet_forward.1} parent=1 // pred_check_branch
      %56 = sbr.rel (0) target = $region29
    $region28: #{linear_qnet_forward.1} parent=1 // pred_region
      %57 = dma.done [#allocation5], 128
    $region29: #{linear_qnet_forward.1} parent=1 // pred_fallthru
      _
    // Predicated region
    $region30: #{linear_qnet_forward.1} parent=1 // pred_check
      _
    $region31: #{linear_qnet_forward.1} parent=1 // pred_check_branch
      %59 = sbr.rel (0) target = $region33
    $region32: #{linear_qnet_forward.1} parent=1 // pred_region
      %60 = dma.done [#allocation5], 1024
    $region33: #{linear_qnet_forward.1} parent=1 // pred_fallthru
      _
    %v62 = vld [vmem:[#allocation2] sm:$0xff]
    %v63 = vld [vmem:[#allocation2 + $0x8] sm:$0xff]
    %v64 = vpack.c.bf16 %v63, %v62
    %v65 = vld [vmem:[#allocation4] sm:$0xf]
    %v66 = vld [vmem:[#allocation4 + $0x4] sm:$0x3]
    %v67 = vld [vmem:[%s2] sm:$0x1]
    %v69 = vlaneseq
    %v70 = vshrl.u32 %v69, 7
    %v71 = vsub.s32 0, %v70
    %v72 = vrot.slane %v67, %v71
    %v76 = vunpack.c.l.b16 %v65
    %v77 = vunpack.c.l.b16 %v66
    %v78 = vpack.c.b16 %v77, %v76
    %vm79 = vcmask 89088
    %v81 = vsel %vm79, %v64, 0
    %vm83 = vcmask 1044480
    %vm84 = vcmask 1045504
    %v85 = vsel %vm83, 4294967295, 65535
    %v86 = vsel %vm84, %v85, 0
    %v88 = vand.u32 %v78, %v86
    %90 = vmatprep.subr.bf16.mxu0 0
    %91 = vmatpush1.bf16.msra.mxu0 %v88
    %92 = vmatprep.subr.bf16.mxu0 0
    %93 = vmatpush1.bf16.msra.mxu0 0
    %94 = vmatprep.subr.bf16.mxu0 0
    %95 = vmatpush1.bf16.msra.mxu0 0
    %96 = vmatprep.subr.bf16.mxu0 0
    %97 = vmatpush1.bf16.msra.mxu0 0
    %98 = vmatprep.subr.bf16.mxu0 0
    %99 = vmatpush1.bf16.msra.mxu0 0
    %100 = vmatprep.subr.bf16.mxu0 0
    %101 = vmatpush1.bf16.msra.mxu0 0
    %102 = vmatprep.subr.bf16.mxu0 0
    %103 = vmatpush1.bf16.msra.mxu0 0
    %104 = vmatprep.subr.bf16.mxu0 0
    %105 = vmatpush1.bf16.msra.mxu0 0
    %106 = vmatprep.subr.bf16.mxu0 0
    %107 = vmatpush1.bf16.msra.mxu0 0
    %108 = vmatprep.subr.bf16.mxu0 0
    %109 = vmatpush1.bf16.msra.mxu0 0
    %110 = vmatprep.subr.bf16.mxu0 0
    %111 = vmatpush1.bf16.msra.mxu0 0
    %112 = vmatprep.subr.bf16.mxu0 0
    %113 = vmatpush1.bf16.msra.mxu0 0
    %114 = vmatprep.subr.bf16.mxu0 0
    %115 = vmatpush1.bf16.msra.mxu0 0
    %116 = vmatprep.subr.bf16.mxu0 0
    %117 = vmatpush1.bf16.msra.mxu0 0
    %118 = vmatprep.subr.bf16.mxu0 0
    %119 = vmatpush1.bf16.msra.mxu0 0
    %120 = vmatprep.subr.bf16.mxu0 0
    %121 = vmatpush1.bf16.msra.mxu0 0
    %122 = vmatprep.mubr.bf16.mxu0 0
    %123 = vmatmul.mubr.bf16.gmra.mrb[0].mxu0 %v81
    %v124 = vpop.f32.mrb[0].mxu0
    %v125 = vadd.f32 %v72, %v124
    %v126 = vpop.f32.mrb[0].mxu0
    %v127 = vpop.f32.mrb[0].mxu0
    %v128 = vadd.f32 %v72, %v127
    %v129 = vpop.f32.mrb[0].mxu0
    %130 = vdwg.mxu0
    %v131 = vmax.f32 %v125, 0.0
    %v132 = vmax.f32 %v128, 0.0
    %v133 = vpack.c.bf16 %v132, %v131
    %v134 = vld [vmem:[#allocation6] sm:$0xf]
    %v135 = vld [vmem:[#allocation6 + $0x4] sm:$0xf]
    %v136 = vld [vmem:[#allocation6 + $0x8] sm:$0xf]
    %v137 = vld [vmem:[#allocation6 + $0xc] sm:$0xf]
    %v138 = vld [vmem:[#allocation6 + $0x10] sm:$0xf]
    %v139 = vld [vmem:[#allocation6 + $0x14] sm:$0xf]
    %v140 = vld [vmem:[#allocation6 + $0x18] sm:$0xf]
    %v141 = vld [vmem:[#allocation6 + $0x1c] sm:$0xf]
    %v142 = vld [vmem:[#allocation6 + $0x20] sm:$0xf]
    %v143 = vld [vmem:[#allocation6 + $0x24] sm:$0xf]
    %v144 = vld [vmem:[#allocation6 + $0x28] sm:$0xf]
    %v145 = vld [vmem:[#allocation6 + $0x2c] sm:$0xf]
    %v146 = vld [vmem:[#allocation6 + $0x30] sm:$0xf]
    %v147 = vld [vmem:[#allocation6 + $0x34] sm:$0xf]
    %v148 = vld [vmem:[#allocation6 + $0x38] sm:$0xf]
    %v149 = vld [vmem:[#allocation6 + $0x3c] sm:$0xf]
    %v150 = vld [vmem:[%s4] sm:$0x1]
    %v152 = vlaneseq
    %v153 = vshrl.u32 %v152, 7
    %v154 = vsub.s32 0, %v153
    %v155 = vrot.slane %v150, %v154
    %v173 = vunpack.c.l.b16 %v134
    %v174 = vunpack.c.l.b16 %v135
    %v175 = vunpack.c.l.b16 %v136
    %v176 = vunpack.c.l.b16 %v137
    %v177 = vunpack.c.l.b16 %v138
    %v178 = vunpack.c.l.b16 %v139
    %v179 = vunpack.c.l.b16 %v140
    %v180 = vunpack.c.l.b16 %v141
    %v181 = vunpack.c.l.b16 %v142
    %v182 = vunpack.c.l.b16 %v143
    %v183 = vunpack.c.l.b16 %v144
    %v184 = vunpack.c.l.b16 %v145
    %v185 = vunpack.c.l.b16 %v146
    %v186 = vunpack.c.l.b16 %v147
    %v187 = vunpack.c.l.b16 %v148
    %v188 = vunpack.c.l.b16 %v149
    %v189 = vpack.c.b16 %v174, %v173
    %v190 = vpack.c.b16 %v176, %v175
    %v191 = vpack.c.b16 %v178, %v177
    %v192 = vpack.c.b16 %v180, %v179
    %v193 = vpack.c.b16 %v182, %v181
    %v194 = vpack.c.b16 %v184, %v183
    %v195 = vpack.c.b16 %v186, %v185
    %v196 = vpack.c.b16 %v188, %v187
    %205 = vmatprep.subr.bf16.mxu0 0
    %206 = vmatpush1.bf16.msra.mxu0 %v189
    %207 = vmatprep.subr.bf16.mxu0 0
    %208 = vmatpush1.bf16.msra.mxu0 %v190
    %209 = vmatprep.subr.bf16.mxu0 0
    %210 = vmatpush1.bf16.msra.mxu0 %v191
    %211 = vmatprep.subr.bf16.mxu0 0
    %212 = vmatpush1.bf16.msra.mxu0 %v192
    %213 = vmatprep.subr.bf16.mxu0 0
    %214 = vmatpush1.bf16.msra.mxu0 %v193
    %215 = vmatprep.subr.bf16.mxu0 0
    %216 = vmatpush1.bf16.msra.mxu0 %v194
    %217 = vmatprep.subr.bf16.mxu0 0
    %218 = vmatpush1.bf16.msra.mxu0 %v195
    %219 = vmatprep.subr.bf16.mxu0 0
    %220 = vmatpush1.bf16.msra.mxu0 %v196
    %221 = vmatprep.subr.bf16.mxu0 0
    %222 = vmatpush1.bf16.msra.mxu0 0
    %223 = vmatprep.subr.bf16.mxu0 0
    %224 = vmatpush1.bf16.msra.mxu0 0
    %225 = vmatprep.subr.bf16.mxu0 0
    %226 = vmatpush1.bf16.msra.mxu0 0
    %227 = vmatprep.subr.bf16.mxu0 0
    %228 = vmatpush1.bf16.msra.mxu0 0
    %229 = vmatprep.subr.bf16.mxu0 0
    %230 = vmatpush1.bf16.msra.mxu0 0
    %231 = vmatprep.subr.bf16.mxu0 0
    %232 = vmatpush1.bf16.msra.mxu0 0
    %233 = vmatprep.subr.bf16.mxu0 0
    %234 = vmatpush1.bf16.msra.mxu0 0
    %235 = vmatprep.subr.bf16.mxu0 0
    %236 = vmatpush1.bf16.msra.mxu0 0
    %237 = vmatprep.mubr.bf16.mxu0 0
    %238 = vmatmul.mubr.bf16.gmra.mrb[0].mxu0 %v133
    %v239 = vpop.f32.mrb[0].mxu0
    %v240 = vadd.f32 %v155, %v239
    %v241 = vpop.f32.mrb[0].mxu0
    %v242 = vpop.f32.mrb[0].mxu0
    %v243 = vadd.f32 %v155, %v242
    %v244 = vpop.f32.mrb[0].mxu0
    %245 = vdwg.mxu0
    %v246 = vpack.c.bf16 %v243, %v240
    %v248 = vunpack.c.l.b16 %v246
    %v249 = vunpack.c.h.b16 %v246
    %v250 = vpack.c.b16 %v248, %v248
    %v251 = vpack.c.b16 %v249, %v249
    %254 = vst [vmem:[%s5] sm:$0xf] %v250
    %255 = vst [vmem:[%s5 + $0x4] sm:$0xf] %v251
    // Predicated region
    $region34: #{linear_qnet_forward.1} parent=1 // pred_check
      _
    $region35: #{linear_qnet_forward.1} parent=1 // pred_check_branch
      %257 = sbr.rel (0) target = $region37
    $region36: #{linear_qnet_forward.1} parent=1 // pred_region
      _
    $region37: #{linear_qnet_forward.1} parent=1 // pred_fallthru
      _
    // Predicated region
    $region38: #{linear_qnet_forward.1} parent=1 // pred_check
      _
    $region39: #{linear_qnet_forward.1} parent=1 // pred_check_branch
      %259 = sbr.rel (0) target = $region41
    $region40: #{linear_qnet_forward.1} parent=1 // pred_region
      _
    $region41: #{linear_qnet_forward.1} parent=1 // pred_fallthru
      _
    %260 = vsyncpa [#allocation3], 1
    %261 = vsyncpa [#allocation5], 1

</llo_original>
